<compile_context>
chip_gen: v7x
topology: tpu7x:2x2x1
jax: 0.10.0
libtpu: 0.0.40
codegen_flags: <defaults>
</compile_context>

<pallas_src>
import math
import functools

import jax
import jax.numpy as jnp
from jax import lax
from jax.experimental import pallas as pl
from jax.experimental.pallas import tpu as pltpu


_VMEM_LIMIT = 48 * 1024 * 1024  # leave headroom on v7x (64 MiB physical / TC)


# ---------------------------------------------------------------------------
# Kernel 1: fused QKV projection (one lane-dense matmul, N = 3*d_model)
# ---------------------------------------------------------------------------
def _qkv_proj_kernel(x_ref, w_ref, b_ref, o_ref):
    o_ref[...] = (
        jnp.dot(x_ref[...], w_ref[...], preferred_element_type=jnp.float32)
        + b_ref[...]
    ).astype(o_ref.dtype)


# ---------------------------------------------------------------------------
# Kernel 2: flash attention (online softmax, causal block skipping) with the
# output projection fused per head via head-major W_O.
# ---------------------------------------------------------------------------
def _flash_attn_wo_kernel(q_ref, k_ref, v_ref, wo_ref, bo_ref, o_ref, acc_ref,
                          *, n_head, d_h, tq, tk):
    cdt = q_ref.dtype
    qi = pl.program_id(1)
    q_start = qi * tq
    # Causal block skipping: kv tiles starting at/after q_end never contribute.
    num_kv = (q_start + tq + tk - 1) // tk

    # (tq, d_model) f32 accumulator for the fused output projection.
    acc_ref[...] = jnp.zeros_like(acc_ref)

    row_ids = q_start + lax.broadcasted_iota(jnp.int32, (tq, tk), 0)
    col_ids = lax.broadcasted_iota(jnp.int32, (tq, tk), 1)
    neg = jnp.float32(-1e30)       # clean underflow in exp; causal mask never
                                   # blanks a full row (col 0 is always valid)
    nt = (((1,), (1,)), ((), ()))  # contract last dims: q @ k.T

    def head_body(h, carry):
        qh = q_ref[0, h]           # (tq, d_h); already scaled by 1/sqrt(d_h)

        def kv_body(j, mla):
            m_prev, l_prev, acc_prev = mla
            start = j * tk
            start_al = pl.multiple_of(start, tk)
            kh = k_ref[0, h, pl.ds(start_al, tk), :]        # (tk, d_h)
            vh = v_ref[0, h, pl.ds(start_al, tk), :]        # (tk, d_h)
            s = lax.dot_general(qh, kh, nt,
                                preferred_element_type=jnp.float32)  # (tq, tk)
            s = jnp.where(start + col_ids <= row_ids, s, neg)
            m_new = jnp.maximum(m_prev, jnp.max(s, axis=-1, keepdims=True))
            alpha = jnp.exp(m_prev - m_new)
            p = jnp.exp(s - m_new)
            l_new = alpha * l_prev + jnp.sum(p, axis=-1, keepdims=True)
            acc_new = alpha * acc_prev + jnp.dot(
                p.astype(cdt), vh, preferred_element_type=jnp.float32)
            return m_new, l_new, acc_new

        m0 = jnp.full((tq, 1), -1e30, jnp.float32)
        l0 = jnp.zeros((tq, 1), jnp.float32)
        a0 = jnp.zeros((tq, d_h), jnp.float32)
        _, l_fin, acc_h = lax.fori_loop(0, num_kv, kv_body, (m0, l0, a0))

        # Post-PV normalization: exact reciprocal, only tq*d_h multiplies
        # (instead of scaling the (tq, S) probability matrix).
        oh = acc_h * (1.0 / l_fin)

        # Fused output projection with the head-major (d_h, d_model) W_O slab:
        # the accumulate/store is lane-dense (width = d_model), never d_h-wide.
        acc_ref[...] += jnp.dot(oh.astype(cdt), wo_ref[h],
                                preferred_element_type=jnp.float32)
        return carry

    lax.fori_loop(0, n_head, head_body, 0)

    o_ref[0] = (acc_ref[...] + bo_ref[...]).astype(o_ref.dtype)


# ---------------------------------------------------------------------------
# Wrapper
# ---------------------------------------------------------------------------
def masked_mhsa(x, w_qkv, b_qkv, w_o, b_o, *, n_head):
    """Causal MHSA forward.

    x:     (B, S, D)   -- pass bf16 for full-rate MXU; f32 also supported.
    w_qkv: (D, 3D)     -- (in, out) layout, i.e. y = x @ W + b (columns q|k|v)
    b_qkv: (3D,)
    w_o:   (D, D)
    b_o:   (D,)
    """
    batch, seq_len, d_model = x.shape
    assert d_model % n_head == 0, "d_model must be divisible by n_head"
    d_h = d_model // n_head
    dt = x.dtype

    # Fold 1/sqrt(d_h) into the query projection (exact).  Scaling b_q as well
    # is intentional: (x @ W_q + b_q) / sqrt(d_h) == scores / sqrt(d_h).
    scale_vec = jnp.concatenate([
        jnp.full((d_model,), 1.0 / math.sqrt(d_h), jnp.float32),
        jnp.ones((2 * d_model,), jnp.float32),
    ])
    w_qkv_s = (w_qkv.astype(jnp.float32) * scale_vec[None, :]).astype(dt)
    b_qkv_s = (b_qkv.astype(jnp.float32) * scale_vec).astype(dt)
    b_qkv_s = b_qkv_s.reshape(1, 3 * d_model)
    wo_hm = w_o.astype(dt).reshape(n_head, d_h, d_model)   # head-major W_O
    bo_2d = b_o.astype(dt).reshape(1, d_model)

    # ---- pass 1: fused QKV projection over row tiles of (B*S, D) ----
    m_rows = batch * seq_len
    tm = m_rows if m_rows <= 256 else 256
    assert m_rows % tm == 0, "batch*seq_len must be divisible by the row tile"
    x2d = x.reshape(m_rows, d_model)

    qkv2d = pl.pallas_call(
        _qkv_proj_kernel,
        out_shape=jax.ShapeDtypeStruct((m_rows, 3 * d_model), dt),
        grid_spec=pltpu.PrefetchScalarGridSpec(
            num_scalar_prefetch=0,
            grid=(m_rows // tm,),
            in_specs=[
                pl.BlockSpec((tm, d_model), lambda i: (i, 0)),
                pl.BlockSpec((d_model, 3 * d_model), lambda i: (0, 0)),
                pl.BlockSpec((1, 3 * d_model), lambda i: (0, 0)),
            ],
            out_specs=pl.BlockSpec((tm, 3 * d_model), lambda i: (i, 0)),
        ),
        compiler_params=pltpu.CompilerParams(
            dimension_semantics=("parallel",),
            vmem_limit_bytes=_VMEM_LIMIT),
    )(x2d, w_qkv_s, b_qkv_s)

    # Head split / transpose to (B, H, S, d_h): layout plumbing between the two
    # kernels (kept outside the kernels so every in-kernel load stays dense).
    qkv = qkv2d.reshape(batch, seq_len, 3, n_head, d_h).transpose(2, 0, 3, 1, 4)
    q, k, v = qkv[0], qkv[1], qkv[2]

    # ---- pass 2: flash attention + fused head-major output projection ----
    tq = seq_len if seq_len <= 128 else 128
    assert seq_len % tq == 0, "seq_len must be divisible by the q tile"
    tk = tq
    num_q_tiles = seq_len // tq

    kernel = functools.partial(_flash_attn_wo_kernel, n_head=n_head, d_h=d_h,
                               tq=tq, tk=tk)

    return pl.pallas_call(
        kernel,
        out_shape=jax.ShapeDtypeStruct((batch, seq_len, d_model), dt),
        grid_spec=pltpu.PrefetchScalarGridSpec(
            num_scalar_prefetch=0,
            grid=(batch, num_q_tiles),
            in_specs=[
                # Q: one q-tile, all heads.
                pl.BlockSpec((1, n_head, tq, d_h), lambda b, qi: (b, 0, qi, 0)),
                # K/V: whole sequence for this batch element; block index is
                # constant across q-tiles so they are DMA'd once per batch.
                pl.BlockSpec((1, n_head, seq_len, d_h),
                             lambda b, qi: (b, 0, 0, 0)),
                pl.BlockSpec((1, n_head, seq_len, d_h),
                             lambda b, qi: (b, 0, 0, 0)),
                # Grid-invariant weights / bias.
                pl.BlockSpec((n_head, d_h, d_model), lambda b, qi: (0, 0, 0)),
                pl.BlockSpec((1, d_model), lambda b, qi: (0, 0)),
            ],
            out_specs=pl.BlockSpec((1, tq, d_model), lambda b, qi: (b, qi, 0)),
            scratch_shapes=[pltpu.VMEM((tq, d_model), jnp.float32)],
        ),
        compiler_params=pltpu.CompilerParams(
            dimension_semantics=("parallel", "parallel"),
            vmem_limit_bytes=_VMEM_LIMIT),
    )(q, k, v, wo_hm, bo_2d)


# ---------------------------------------------------------------------------
# Pure-JAX reference mirroring the PyTorch forward (fused-QKV path)
# ---------------------------------------------------------------------------
def masked_mhsa_reference(x, w_qkv, b_qkv, w_o, b_o, *, n_head):
    batch, seq_len, d_model = x.shape
    d_h = d_model // n_head
    qkv = x @ w_qkv + b_qkv
    q, k, v = jnp.split(qkv, 3, axis=-1)

    def heads(t):
        return t.reshape(batch, seq_len, n_head, d_h).transpose(0, 2, 1, 3)

    q, k, v = heads(q), heads(k), heads(v)
    sim = jnp.einsum("bhqd,bhkd->bhqk", q, k) / math.sqrt(d_h)
    mask = jnp.tril(jnp.ones((seq_len, seq_len), dtype=bool))[None, None]
    sim = jnp.where(mask, sim, jnp.finfo(sim.dtype).min)
    attn = jax.nn.softmax(sim, axis=-1)
    out = jnp.einsum("bhqk,bhkd->bhqd", attn, v)
    out = out.transpose(0, 2, 1, 3).reshape(batch, seq_len, d_model)
    return out @ w_o + b_o


if __name__ == "__main__":
    # Small, forward-consistent shapes.
    batch, seq_len, d_model, n_head = 2, 8, 32, 4

    key = jax.random.PRNGKey(0)
    kx, kw1, kb1, kw2, kb2 = jax.random.split(key, 5)

    # Deterministic nn.Linear-style init (uniform in +-1/sqrt(fan_in)),
    # stored as (in, out) so y = x @ W + b.
    bound = 1.0 / math.sqrt(d_model)
    x = jax.random.normal(kx, (batch, seq_len, d_model), dtype=jnp.float32)
    w_qkv = jax.random.uniform(kw1, (d_model, 3 * d_model), jnp.float32,
                               -bound, bound)
    b_qkv = jax.random.uniform(kb1, (3 * d_model,), jnp.float32, -bound, bound)
    w_o = jax.random.uniform(kw2, (d_model, d_model), jnp.float32,
                             -bound, bound)
    b_o = jax.random.uniform(kb2, (d_model,), jnp.float32, -bound, bound)

    out = masked_mhsa(x, w_qkv, b_qkv, w_o, b_o, n_head=n_head)
    out = jax.block_until_ready(out)

    ref = masked_mhsa_reference(x, w_qkv, b_qkv, w_o, b_o, n_head=n_head)
    assert out.shape == (batch, seq_len, d_model)
    # Tolerance only covers XLA default-precision matmuls in the pure-JAX
    # reference / online-vs-plain softmax reassociation; the kernel itself
    # uses exact normalization (no approx reciprocal anymore).
    assert jnp.allclose(out, ref, atol=1e-2, rtol=1e-2), "mismatch vs reference"

    print("KERNEL_OK")
</pallas_src>

<mosaic_0001>
module attributes {stable_mosaic.version = 11 : i64} {
  func.func @_qkv_proj_kernel(%arg0: i32, %arg1: memref<16x32xf32, #tpu.memory_space<vmem>>, %arg2: memref<32x96xf32, #tpu.memory_space<vmem>>, %arg3: memref<1x96xf32, #tpu.memory_space<vmem>>, %arg4: memref<16x96xf32, #tpu.memory_space<vmem>>) attributes {dimension_semantics = [#tpu.dimension_semantics<parallel>], iteration_bounds = array<i64: 1>, scalar_prefetch = 0 : i64, scratch_operands = 0 : i64, tpu.core_type = #tpu.core_type<tc>, window_params = [{transform_indices = @transform_0, window_bounds = array<i64: 16, 32>}, {pipeline_mode = #tpu.pipeline_mode<synchronous>, transform_indices = @transform_1, window_bounds = array<i64: 32, 96>}, {pipeline_mode = #tpu.pipeline_mode<synchronous>, transform_indices = @transform_2, window_bounds = array<i64: 1, 96>}, {transform_indices = @transform_3, window_bounds = array<i64: 16, 96>}]} {
    %c0 = arith.constant 0 : index
    %c0_0 = arith.constant 0 : index
    %0 = vector.load %arg1[%c0, %c0_0] : memref<16x32xf32, #tpu.memory_space<vmem>>, vector<16x32xf32>
    %c0_1 = arith.constant 0 : index
    %c0_2 = arith.constant 0 : index
    %1 = vector.load %arg2[%c0_1, %c0_2] : memref<32x96xf32, #tpu.memory_space<vmem>>, vector<32x96xf32>
    %cst = arith.constant dense<0.000000e+00> : vector<16x96xf32>
    %2 = tpu.matmul %0, %1, %cst {dimension_numbers = #tpu.dot_dimension_numbers<[1], [0], [0], [1], [0, 0, 1, 1], [], []>} : vector<16x32xf32>, vector<32x96xf32>, vector<16x96xf32> -> vector<16x96xf32>
    %c0_3 = arith.constant 0 : index
    %c0_4 = arith.constant 0 : index
    %3 = vector.load %arg3[%c0_3, %c0_4] : memref<1x96xf32, #tpu.memory_space<vmem>>, vector<1x96xf32>
    %4 = vector.broadcast %3 : vector<1x96xf32> to vector<16x96xf32>
    %5 = arith.addf %2, %4 : vector<16x96xf32>
    %c0_5 = arith.constant 0 : index
    %c0_6 = arith.constant 0 : index
    %6 = vector.load %arg4[%c0_5, %c0_6] : memref<16x96xf32, #tpu.memory_space<vmem>>, vector<16x96xf32>
    tpu.vector_store %arg4[%c0_5, %c0_6], %5 {strides = array<i32>} : memref<16x96xf32, #tpu.memory_space<vmem>>, vector<16x96xf32>,
    return
  }
  func.func @transform_0(%arg0: i32) -> (i32, i32) {
    %c0_i32 = arith.constant 0 : i32
    %c0_i32_0 = arith.constant 0 : i32
    return %arg0, %c0_i32 : i32, i32
  }
  func.func @transform_1(%arg0: i32) -> (i32, i32) {
    %c0_i32 = arith.constant 0 : i32
    %c0_i32_0 = arith.constant 0 : i32
    %c0_i32_1 = arith.constant 0 : i32
    return %c0_i32, %c0_i32_0 : i32, i32
  }
  func.func @transform_2(%arg0: i32) -> (i32, i32) {
    %c0_i32 = arith.constant 0 : i32
    %c0_i32_0 = arith.constant 0 : i32
    %c0_i32_1 = arith.constant 0 : i32
    return %c0_i32, %c0_i32_0 : i32, i32
  }
  func.func @transform_3(%arg0: i32) -> (i32, i32) {
    %c0_i32 = arith.constant 0 : i32
    %c0_i32_0 = arith.constant 0 : i32
    return %arg0, %c0_i32 : i32, i32
  }
}

</mosaic_0001>

<llo_original>
// kernel: tpu_custom_call.1
$region0: #{tpu_custom_call.1}
  #allocation0 [shape = 'u32[]', space=smem, size = 0x4, offset = 0x4, fixed_abs, tag = 'smem constant byte address 0x4 - core index']
  #allocation1 [shape = 'u32[144,128]{1,0:T(1,128)}', space=vmem, size = 0x12000, scoped, tag = 'internal scratch']
  %s0 = inlined_call_operand.hbm [shape: f32[16,32], index: 0, kind: input, shape index: {}]
  %s1 = inlined_call_operand.hbm [shape: f32[32,96], index: 1, kind: input, shape index: {}]
  %s2 = inlined_call_operand.vmem [shape: f32[1,96], index: 2, kind: input, shape index: {}]
  %s3 = inlined_call_operand.hbm [shape: f32[16,96], index: 3, kind: output, shape index: {}]
  %s4 = sld [smem:[#allocation0]]
  $region30: #{tpu_custom_call.1} parent=0
    _
  %s6 = ssub.s32 1, %s4
  %s7 = scalar_select 0, %s6, %s4
  $region1: #{tpu_custom_call.1} parent=0
    #allocation2 [shape = 'u8[8192]{0}', space=vmem, size = 0x2000, scoped, tag = 'input window, operand 0, single buffered']
    #allocation3 [shape = 's32[1]{0}', space=sflag, size = 0x4, scoped, tag = 'scoped memory for tpu_custom_call.1']
    #allocation4 [shape = 's32[1]{0}', space=sflag, size = 0x4, scoped, tag = 'scoped memory for tpu_custom_call.1']
    #allocation5 [shape = 'u8[16384]{0}', space=vmem, size = 0x4000, scoped, tag = 'input window, operand 1, single buffered']
    #allocation6 [shape = 's32[1]{0}', space=sflag, size = 0x4, scoped, tag = 'scoped memory for tpu_custom_call.1']
    #allocation7 [shape = 'u8[8192]{0}', space=vmem, size = 0x2000, scoped, tag = 'output window, operand 0, single buffered']
    %8 = vsyncpa [#allocation3], 0
    %9 = vsyncpa [#allocation6], 0
    %10 = vsyncpa [#allocation4], 0
    // Predicated region
    $region2: #{tpu_custom_call.1} parent=1 // pred_check
      _
    $region3: #{tpu_custom_call.1} parent=1 // pred_check_branch
      %12 = sbr.rel (0) target = $region5
    $region4: #{tpu_custom_call.1} parent=1 // pred_region
      %s14 = ssub.s32 256, 256
      %15 = vsyncadd [#allocation3], %s14
      %s16 = sshll.u32 [#allocation2], 4
      %s17 = int_to_ptr.vmem [resolvable:$true] %s16
      %22 = dma.hbm_to_vmem [thread:$0]  %s0, 256, %s17, [#allocation3], 128, 128, 8
    $region5: #{tpu_custom_call.1} parent=1 // pred_fallthru
      _
    // Predicated region
    $region6: #{tpu_custom_call.1} parent=1 // pred_check
      _
    $region7: #{tpu_custom_call.1} parent=1 // pred_check_branch
      %24 = sbr.rel (0) target = $region9
    $region8: #{tpu_custom_call.1} parent=1 // pred_region
      %s26 = ssub.s32 512, 512
      %27 = vsyncadd [#allocation6], %s26
      %s28 = sshll.u32 [#allocation5], 4
      %s29 = int_to_ptr.vmem [resolvable:$true] %s28
      %34 = dma.hbm_to_vmem [thread:$0]  %s1, 512, %s29, [#allocation6], 128, 128, 8
    $region9: #{tpu_custom_call.1} parent=1 // pred_fallthru
      _
    // Predicated region
    $region10: #{tpu_custom_call.1} parent=1 // pred_check
      _
    $region11: #{tpu_custom_call.1} parent=1 // pred_check_branch
      %36 = sbr.rel (0) target = $region13
    $region12: #{tpu_custom_call.1} parent=1 // pred_region
      _
    $region13: #{tpu_custom_call.1} parent=1 // pred_fallthru
      _
    // Predicated region
    $region14: #{tpu_custom_call.1} parent=1 // pred_check
      _
    $region15: #{tpu_custom_call.1} parent=1 // pred_check_branch
      %38 = sbr.rel (0) target = $region17
    $region16: #{tpu_custom_call.1} parent=1 // pred_region
      %39 = dma.done [#allocation3], 256
    $region17: #{tpu_custom_call.1} parent=1 // pred_fallthru
      _
    // Predicated region
    $region18: #{tpu_custom_call.1} parent=1 // pred_check
      _
    $region19: #{tpu_custom_call.1} parent=1 // pred_check_branch
      %41 = sbr.rel (0) target = $region21
    $region20: #{tpu_custom_call.1} parent=1 // pred_region
      %42 = dma.done [#allocation6], 512
    $region21: #{tpu_custom_call.1} parent=1 // pred_fallthru
      _
    %v43 = vld [vmem:[#allocation2] sm:$0xff]
    %v44 = vld [vmem:[#allocation2 + $0x8] sm:$0xff]
    %v45 = vld [vmem:[#allocation5] sm:$0xff]
    %v46 = vld [vmem:[#allocation5 + $0x8] sm:$0xff]
    %v47 = vld [vmem:[#allocation5 + $0x10] sm:$0xff]
    %v48 = vld [vmem:[#allocation5 + $0x18] sm:$0xff]
    %v49 = vld [vmem:[%s2] sm:$0x1]
    %v51 = vlaneseq
    %v52 = vshrl.u32 %v51, 7
    %v53 = vsub.s32 0, %v52
    %v54 = vrot.slane %v49, %v53
    %vm56 = vcmask 261120
    %v58 = vsel %vm56, %v43, 0
    %v61 = vsel %vm56, %v44, 0
    %63 = vmatprep.subr.mxu0 0.0
    %64 = vmatpush1.msra.mxu0 %v45
    %65 = vmatprep.subr.mxu0 0.0
    %66 = vmatpush1.msra.mxu0 %v46
    %67 = vmatprep.subr.mxu0 0.0
    %68 = vmatpush1.msra.mxu0 %v47
    %69 = vmatprep.subr.mxu0 0.0
    %70 = vmatpush1.msra.mxu0 %v48
    %71 = vmatprep.subr.mxu0 0.0
    %72 = vmatpush1.msra.mxu0 0.0
    %73 = vmatprep.subr.mxu0 0.0
    %74 = vmatpush1.msra.mxu0 0.0
    %75 = vmatprep.subr.mxu0 0.0
    %76 = vmatpush1.msra.mxu0 0.0
    %77 = vmatprep.subr.mxu0 0.0
    %78 = vmatpush1.msra.mxu0 0.0
    %79 = vmatprep.subr.mxu0 0.0
    %80 = vmatpush1.msra.mxu0 0.0
    %81 = vmatprep.subr.mxu0 0.0
    %82 = vmatpush1.msra.mxu0 0.0
    %83 = vmatprep.subr.mxu0 0.0
    %84 = vmatpush1.msra.mxu0 0.0
    %85 = vmatprep.subr.mxu0 0.0
    %86 = vmatpush1.msra.mxu0 0.0
    %87 = vmatprep.subr.mxu0 0.0
    %88 = vmatpush1.msra.mxu0 0.0
    %89 = vmatprep.subr.mxu0 0.0
    %90 = vmatpush1.msra.mxu0 0.0
    %91 = vmatprep.subr.mxu0 0.0
    %92 = vmatpush1.msra.mxu0 0.0
    %93 = vmatprep.subr.mxu0 0.0
    %94 = vmatpush1.msra.mxu0 0.0
    %95 = vmatprep.subr.mxu0 0.0
    %96 = vmatpush1.msra.mxu0 0.0
    %97 = vmatprep.subr.mxu0 0.0
    %98 = vmatpush1.msra.mxu0 0.0
    %99 = vmatprep.subr.mxu0 0.0
    %100 = vmatpush1.msra.mxu0 0.0
    %101 = vmatprep.subr.mxu0 0.0
    %102 = vmatpush1.msra.mxu0 0.0
    %103 = vmatprep.subr.mxu0 0.0
    %104 = vmatpush1.msra.mxu0 0.0
    %105 = vmatprep.subr.mxu0 0.0
    %106 = vmatpush1.msra.mxu0 0.0
    %107 = vmatprep.subr.mxu0 0.0
    %108 = vmatpush1.msra.mxu0 0.0
    %109 = vmatprep.subr.mxu0 0.0
    %110 = vmatpush1.msra.mxu0 0.0
    %111 = vmatprep.subr.mxu0 0.0
    %112 = vmatpush1.msra.mxu0 0.0
    %113 = vmatprep.subr.mxu0 0.0
    %114 = vmatpush1.msra.mxu0 0.0
    %115 = vmatprep.subr.mxu0 0.0
    %116 = vmatpush1.msra.mxu0 0.0
    %117 = vmatprep.subr.mxu0 0.0
    %118 = vmatpush1.msra.mxu0 0.0
    %119 = vmatprep.subr.mxu0 0.0
    %120 = vmatpush1.msra.mxu0 0.0
    %121 = vmatprep.subr.mxu0 0.0
    %122 = vmatpush1.msra.mxu0 0.0
    %123 = vmatprep.subr.mxu0 0.0
    %124 = vmatpush1.msra.mxu0 0.0
    %125 = vmatprep.subr.mxu0 0.0
    %126 = vmatpush1.msra.mxu0 0.0
    %127 = vmatprep.mubr.f32.mxu0 0.0
    %128 = vmatmul.mubr.f32.gmra.mrb[0].mxu0 %v58
    %v129 = vpop.f32.mrb[0].mxu0
    %v130 = vadd.f32 %v54, %v129
    %v131 = vpop.f32.mrb[0].mxu0
    %132 = vmatprep.mubr.f32.mxu0 0.0
    %133 = vmatmul.mubr.f32.gmra.mrb[0].mxu0 %v61
    %v134 = vpop.f32.mrb[0].mxu0
    %v135 = vadd.f32 %v54, %v134
    %v136 = vpop.f32.mrb[0].mxu0
    %137 = vdwg.mxu0
    %vm138 = vcmask 785408
    %139 = vst.msk [vmem:[#allocation7] sm:$0xff] %vm138, %v130
    %140 = vst.msk [vmem:[#allocation7 + $0x8] sm:$0xff] %vm138, %v135
    // Predicated region
    $region22: #{tpu_custom_call.1} parent=1 // pred_check
      _
    $region23: #{tpu_custom_call.1} parent=1 // pred_check_branch
      %142 = sbr.rel (0) target = $region25
    $region24: #{tpu_custom_call.1} parent=1 // pred_region
      %s144 = ssub.s32 256, 256
      %145 = vsyncadd [#allocation4], %s144
      %s146 = sshll.u32 [#allocation7], 4
      %s147 = int_to_ptr.vmem [resolvable:$true] %s146
      %152 = dma.vmem_to_hbm [thread:$0]  %s147, 256, %s3, [#allocation4], 128, 128, 8
    $region25: #{tpu_custom_call.1} parent=1 // pred_fallthru
      _
    // Predicated region
    $region26: #{tpu_custom_call.1} parent=1 // pred_check
      _
    $region27: #{tpu_custom_call.1} parent=1 // pred_check_branch
      %154 = sbr.rel (0) target = $region29
    $region28: #{tpu_custom_call.1} parent=1 // pred_region
      %155 = dma.done [#allocation4], 256
    $region29: #{tpu_custom_call.1} parent=1 // pred_fallthru
      _
    %156 = vsyncpa [#allocation3], 1
    %157 = vsyncpa [#allocation6], 1
    %158 = vsyncpa [#allocation4], 1

</llo_original>
